<compile_context>
chip_gen: v7x
topology: tpu7x:2x2x1
jax: 0.10.0
libtpu: 0.0.40
codegen_flags: <defaults>
</compile_context>

<pallas_src>
import jax
import jax.numpy as jnp
from jax.experimental import pallas as pl
from jax.experimental.pallas import tpu as pltpu

IGNORE_INDEX = -100.0
LANES = 128
MAX_ROW_TILE = 2048   # rows per input block: 2048*128*4B = 1 MiB per input block
NUM_CORES = 2         # leading "parallel" grid axis (v7x has 2 TCs per chip)


def _make_kernel(row_tile, blocks_per_core, valid_rows, need_row_mask):
    sub_groups = row_tile // 8

    def kernel(logits_ref, targets_ref, out_ref):
        i = pl.program_id(1)

        @pl.when(i == 0)
        def _init():
            out_ref[...] = jnp.zeros_like(out_ref)

        x = logits_ref[...].astype(jnp.float32)
        t = targets_ref[...].astype(jnp.float32)

        # Numerically stable BCE-with-logits (matches torch BCEWithLogitsLoss):
        #   loss = max(x, 0) - x*y + log1p(exp(-|x|))
        loss = jnp.maximum(x, 0.0) - x * t + jnp.log1p(jnp.exp(-jnp.abs(x)))

        valid = t != IGNORE_INDEX
        if need_row_mask:
            # Mask rows with no backing data: the ragged part of the last block
            # and phantom blocks created by the 2-core split.
            g = pl.program_id(0) * blocks_per_core + i   # unclamped block id
            row_ids = g * row_tile + jax.lax.broadcasted_iota(
                jnp.int32, (row_tile, LANES), 0)
            valid = jnp.logical_and(valid, row_ids < valid_rows)

        loss = jnp.where(valid, loss, 0.0)

        # Fold (row_tile, 128) -> (8, 128): layout-preserving reshape + sum over
        # the leading vreg-group axis (pure VPU adds, no per-step XLU reduce).
        out_ref[...] += loss.reshape(sub_groups, 8, LANES).sum(axis=0)

    return kernel


def sum_bce_with_logits_loss(logits: jax.Array, targets: jax.Array) -> jax.Array:
    """Pallas TPU implementation of SumBCEWithLogitsLoss.forward."""
    assert logits.shape == targets.shape
    n = int(logits.size)
    if n == 0:
        return jnp.float32(0.0)

    x = logits.reshape(-1)
    t = targets.reshape(-1)

    # Rare path: only pad when the element count is not a multiple of one
    # (8, 128) row-group; padded targets = ignore_index -> contribute zero.
    chunk = 8 * LANES
    pad = (-n) % chunk
    if pad:
        x = jnp.concatenate([x, jnp.zeros((pad,), x.dtype)])
        t = jnp.concatenate([t, jnp.full((pad,), IGNORE_INDEX, t.dtype)])

    m = (n + pad) // LANES                 # rows; multiple of 8
    x2 = x.reshape(m, LANES)
    t2 = t.reshape(m, LANES)

    row_tile = min(MAX_ROW_TILE, m)
    num_blocks = -(-m // row_tile)
    bpc = -(-num_blocks // NUM_CORES)      # blocks per core
    has_phantom = NUM_CORES * bpc != num_blocks
    need_row_mask = NUM_CORES * bpc * row_tile != m

    def in_map(c, i):
        g = c * bpc + i
        if has_phantom:
            g = jnp.minimum(g, num_blocks - 1)   # keep the DMA in bounds
        return (g, 0)

    kernel = _make_kernel(row_tile, bpc, m, need_row_mask)

    out = pl.pallas_call(
        kernel,
        out_shape=jax.ShapeDtypeStruct((NUM_CORES * 8, LANES), jnp.float32),
        grid_spec=pltpu.PrefetchScalarGridSpec(
            num_scalar_prefetch=0,
            grid=(NUM_CORES, bpc),
            in_specs=[
                pl.BlockSpec((row_tile, LANES), in_map),
                pl.BlockSpec((row_tile, LANES), in_map),
            ],
            out_specs=pl.BlockSpec((8, LANES), lambda c, i: (c, 0)),
        ),
        compiler_params=pltpu.CompilerParams(
            dimension_semantics=("parallel", "arbitrary"),
        ),
    )(x2, t2)
    # Final reduce of the tiny per-core partials (16 x 128 f32).
    return jnp.sum(out)


def _reference(logits, targets):
    x = logits.astype(jnp.float32)
    y = targets.astype(jnp.float32)
    loss = jnp.maximum(x, 0.0) - x * y + jnp.log1p(jnp.exp(-jnp.abs(x)))
    mask = targets.astype(jnp.float32) != IGNORE_INDEX
    return jnp.sum(jnp.where(mask, loss, 0.0))


if __name__ == "__main__":
    key = jax.random.PRNGKey(0)
    k1, k2, k3 = jax.random.split(key, 3)

    # Small NCHW classifier output: [B, C, H, W]
    B, C, H, W = 2, 4, 16, 16
    logits = jax.random.normal(k1, (B, C, H, W), dtype=jnp.float32)
    targets = jax.random.bernoulli(k2, 0.5, (B, C, H, W)).astype(jnp.float32)
    ignore_mask = jax.random.bernoulli(k3, 0.2, (B, C, H, W))
    targets = jnp.where(ignore_mask, IGNORE_INDEX, targets)

    result = jax.block_until_ready(sum_bce_with_logits_loss(logits, targets))
    ref = _reference(logits, targets)
    assert jnp.allclose(result, ref, rtol=1e-5, atol=1e-4), (result, ref)

    # Extra coverage: multi-block big-tile path and a ragged (pad) path.
    k4, k5, k6 = jax.random.split(k3, 3)
    big_logits = jax.random.normal(k4, (2, 8, 128, 128), dtype=jnp.float32)
    big_targets = jnp.where(
        jax.random.bernoulli(k5, 0.1, big_logits.shape),
        IGNORE_INDEX,
        jax.random.bernoulli(k6, 0.5, big_logits.shape).astype(jnp.float32))
    r_big = jax.block_until_ready(sum_bce_with_logits_loss(big_logits, big_targets))
    assert jnp.allclose(r_big, _reference(big_logits, big_targets),
                        rtol=1e-4, atol=1e-2), r_big

    ragged_logits = jax.random.normal(k4, (3, 5, 7, 11), dtype=jnp.float32)
    ragged_targets = jax.random.bernoulli(k5, 0.5, (3, 5, 7, 11)).astype(jnp.float32)
    r_rag = jax.block_until_ready(
        sum_bce_with_logits_loss(ragged_logits, ragged_targets))
    assert jnp.allclose(r_rag, _reference(ragged_logits, ragged_targets),
                        rtol=1e-5, atol=1e-3), r_rag

    print("KERNEL_OK")
</pallas_src>

<mosaic_0001>
module attributes {stable_mosaic.version = 11 : i64} {
  func.func @kernel(%arg0: i32, %arg1: i32, %arg2: memref<16x128xf32, #tpu.memory_space<vmem>>, %arg3: memref<16x128xf32, #tpu.memory_space<vmem>>, %arg4: memref<8x128xf32, #tpu.memory_space<vmem>>) attributes {dimension_semantics = [#tpu.dimension_semantics<parallel>, #tpu.dimension_semantics<arbitrary>], iteration_bounds = array<i64: 2, 1>, scalar_prefetch = 0 : i64, scratch_operands = 0 : i64, tpu.core_type = #tpu.core_type<tc>, window_params = [{transform_indices = @transform_0, window_bounds = array<i64: 16, 128>}, {transform_indices = @transform_1, window_bounds = array<i64: 16, 128>}, {transform_indices = @transform_2, window_bounds = array<i64: 8, 128>}]} {
    %c0_i32 = arith.constant 0 : i32
    %0 = arith.cmpi eq, %arg1, %c0_i32 : i32
    %1 = arith.extui %0 : i1 to i32
    %c0_i32_0 = arith.constant 0 : i32
    %2 = arith.cmpi ne, %1, %c0_i32_0 : i32
    scf.if %2 {
      %cst_13 = arith.constant 0.000000e+00 : f32
      %33 = vector.broadcast %cst_13 : f32 to vector<8x128xf32>
      %c0_14 = arith.constant 0 : index
      %c0_15 = arith.constant 0 : index
      %34 = vector.load %arg4[%c0_14, %c0_15] : memref<8x128xf32, #tpu.memory_space<vmem>>, vector<8x128xf32>
      tpu.vector_store %arg4[%c0_14, %c0_15], %33 {strides = array<i32>} : memref<8x128xf32, #tpu.memory_space<vmem>>, vector<8x128xf32>,
    } else {
    }
    %c0 = arith.constant 0 : index
    %c0_1 = arith.constant 0 : index
    %3 = vector.load %arg2[%c0, %c0_1] : memref<16x128xf32, #tpu.memory_space<vmem>>, vector<16x128xf32>
    %c0_2 = arith.constant 0 : index
    %c0_3 = arith.constant 0 : index
    %4 = vector.load %arg3[%c0_2, %c0_3] : memref<16x128xf32, #tpu.memory_space<vmem>>, vector<16x128xf32>
    %cst = arith.constant 0.000000e+00 : f32
    %5 = vector.broadcast %cst : f32 to vector<16x128xf32>
    %6 = arith.maximumf %3, %5 : vector<16x128xf32>
    %7 = arith.mulf %3, %4 : vector<16x128xf32>
    %8 = arith.subf %6, %7 : vector<16x128xf32>
    %9 = math.absf %3 : vector<16x128xf32>
    %cst_4 = arith.constant 0.000000e+00 : f32
    %10 = vector.broadcast %cst_4 : f32 to vector<16x128xf32>
    %11 = arith.subf %10, %9 : vector<16x128xf32>
    %12 = math.exp %11 : vector<16x128xf32>
    %13 = math.log1p %12 : vector<16x128xf32>
    %14 = arith.addf %8, %13 : vector<16x128xf32>
    %cst_5 = arith.constant -1.000000e+02 : f32
    %15 = vector.broadcast %cst_5 : f32 to vector<16x128xf32>
    %16 = arith.cmpf one, %4, %15 : vector<16x128xf32>
    %c1_i32 = arith.constant 1 : i32
    %17 = arith.muli %arg0, %c1_i32 : i32
    %18 = arith.addi %17, %arg1 : i32
    %c16_i32 = arith.constant 16 : i32
    %19 = arith.muli %18, %c16_i32 : i32
    %20 = tpu.iota {dimensions = array<i32: 0>} : vector<16x128xi32>
    %21 = vector.broadcast %19 : i32 to vector<16x128xi32>
    %22 = arith.addi %21, %20 : vector<16x128xi32>
    %c16_i32_6 = arith.constant 16 : i32
    %23 = vector.broadcast %c16_i32_6 : i32 to vector<16x128xi32>
    %24 = arith.cmpi slt, %22, %23 : vector<16x128xi32>
    %25 = arith.andi %16, %24 : vector<16x128xi1>
    %cst_7 = arith.constant 0.000000e+00 : f32
    %26 = vector.broadcast %cst_7 : f32 to vector<16x128xf32>
    %27 = arith.select %25, %14, %26 : vector<16x128xi1>, vector<16x128xf32>
    %c0_8 = arith.constant 0 : index
    %c0_9 = arith.constant 0 : index
    %28 = vector.load %arg4[%c0_8, %c0_9] : memref<8x128xf32, #tpu.memory_space<vmem>>, vector<8x128xf32>
    %29 = vector.shape_cast %27 : vector<16x128xf32> to vector<2x8x128xf32>
    %cst_10 = arith.constant dense<0.000000e+00> : vector<8x128xf32>
    %30 = vector.multi_reduction <add>, %29, %cst_10 [0] : vector<2x8x128xf32> to vector<8x128xf32>
    %31 = arith.addf %28, %30 : vector<8x128xf32>
    %c0_11 = arith.constant 0 : index
    %c0_12 = arith.constant 0 : index
    %32 = vector.load %arg4[%c0_11, %c0_12] : memref<8x128xf32, #tpu.memory_space<vmem>>, vector<8x128xf32>
    tpu.vector_store %arg4[%c0_11, %c0_12], %31 {strides = array<i32>} : memref<8x128xf32, #tpu.memory_space<vmem>>, vector<8x128xf32>,
    return
  }
  func.func @transform_0(%arg0: i32, %arg1: i32) -> (i32, i32) {
    %c1_i32 = arith.constant 1 : i32
    %0 = arith.muli %arg0, %c1_i32 : i32
    %1 = arith.addi %0, %arg1 : i32
    %c0_i32 = arith.constant 0 : i32
    %2 = arith.minsi %1, %c0_i32 : i32
    %c0_i32_0 = arith.constant 0 : i32
    %c0_i32_1 = arith.constant 0 : i32
    return %2, %c0_i32_0 : i32, i32
  }
  func.func @transform_1(%arg0: i32, %arg1: i32) -> (i32, i32) {
    %c1_i32 = arith.constant 1 : i32
    %0 = arith.muli %arg0, %c1_i32 : i32
    %1 = arith.addi %0, %arg1 : i32
    %c0_i32 = arith.constant 0 : i32
    %2 = arith.minsi %1, %c0_i32 : i32
    %c0_i32_0 = arith.constant 0 : i32
    %c0_i32_1 = arith.constant 0 : i32
    return %2, %c0_i32_0 : i32, i32
  }
  func.func @transform_2(%arg0: i32, %arg1: i32) -> (i32, i32) {
    %c0_i32 = arith.constant 0 : i32
    %c0_i32_0 = arith.constant 0 : i32
    return %arg0, %c0_i32 : i32, i32
  }
}

</mosaic_0001>

<llo_original>
// kernel: tpu_custom_call.1
$region0: #{tpu_custom_call.1}
  #allocation0 [shape = 'u32[]', space=smem, size = 0x4, offset = 0x4, fixed_abs, tag = 'smem constant byte address 0x4 - core index']
  #allocation1 [shape = 'u32[144,128]{1,0:T(1,128)}', space=vmem, size = 0x12000, scoped, tag = 'internal scratch']
  %s0 = inlined_call_operand.hbm [shape: f32[16,128], index: 0, kind: input, shape index: {}]
  %s1 = inlined_call_operand.hbm [shape: f32[16,128], index: 1, kind: input, shape index: {}]
  %s2 = inlined_call_operand.hbm [shape: f32[16,128], index: 2, kind: output, shape index: {}]
  %s3 = sld [smem:[#allocation0]]
  $region53: #{tpu_custom_call.1} parent=0
    _
  %s5 = ssub.s32 1, %s3
  %s6 = scalar_select 0, %s5, %s3
  $region1: #{tpu_custom_call.1} parent=0
    #allocation2 [shape = 'u8[16384]{0}', space=vmem, size = 0x4000, scoped, tag = 'input window, operand 0']
    #allocation3 [shape = 's32[2]{0}', space=sflag, size = 0x8, scoped, tag = 'scoped memory for tpu_custom_call.1']
    #allocation4 [shape = 's32[2]{0}', space=sflag, size = 0x8, scoped, tag = 'scoped memory for tpu_custom_call.1']
    #allocation5 [shape = 'u8[16384]{0}', space=vmem, size = 0x4000, scoped, tag = 'input window, operand 1']
    #allocation6 [shape = 's32[2]{0}', space=sflag, size = 0x8, scoped, tag = 'scoped memory for tpu_custom_call.1']
    #allocation7 [shape = 'u8[8192]{0}', space=vmem, size = 0x2000, scoped, tag = 'output window, operand 0']
    %7 = vsyncpa [#allocation3], 0
    %s8 = scalar_lea.sflag [#allocation3], 1
    %9 = vsyncpa %s8, 0
    %10 = vsyncpa [#allocation6], 0
    %s11 = scalar_lea.sflag [#allocation6], 1
    %12 = vsyncpa %s11, 0
    %13 = vsyncpa [#allocation4], 0
    %s14 = scalar_lea.sflag [#allocation4], 1
    %15 = vsyncpa %s14, 0
    loop: start=0, step=1, limit=4
    $region2: #{tpu_custom_call.1} parent=1 // loop_pre_header
      _
    $region3: #{tpu_custom_call.1} parent=1 // loop_header
      %s17 = sphi 0, %s21
      %p18 = scmp.ge.s32.totalorder %s17, 4
      %s24 = sphi 0, %s36
      %s25 = sphi 0, %s32
      %s26 = sphi 0, %s24
      %s27 = sphi 0, %s25
      %s28 = sphi 0, %s26
      %s29 = sphi 0, %s27
      %s45 = sphi 0, %s47
      %s48 = sphi 0, %s45
      %s49 = sphi 0, %s48
      %s65 = sphi 0, %s49
      %s77 = sphi 0, %s79
      %s80 = sphi 0, %s77
      %s81 = sphi 0, %s80
      %s97 = sphi 0, %s81
      %s103 = sphi 0, %s105
      %s106 = sphi 0, %s103
      %s107 = sphi 0, %s106
      %s123 = sphi 0, %s107
    $region4: #{tpu_custom_call.1} parent=1 // loop_header_branch
      %20 = sbr.rel (%p18) target = $region8
    $region5: #{tpu_custom_call.1} parent=1 // loop_body
      %s22 = ssub.s32 %s17, 1
      %s23 = ssub.s32 %s17, 2
      %s30 = sadd.s32 1, %s25
      %p31 = scmp.ge.s32.totalorder %s30, 1
      %s32 = scalar_select %p31, 0, %s30
      %s33 = sadd.s32 1, %s24
      %s34 = scalar_select %p31, %s33, %s24
      %p35 = scmp.ge.s32.totalorder %s34, 2
      %s36 = scalar_select %p35, 0, %s34
      %s37 = sadd.s32 %s24, %s25
      %p38 = scmp.lt.s32.totalorder %s37, 0
      %s39 = scalar_select %p38, %s37, 0
      %s40 = sadd.s32 %s36, %s32
      %p41 = scmp.lt.s32.totalorder %s40, 0
      %s42 = scalar_select %p41, %s40, 0
      %s43 = ssub.s32 %s39, %s42
      %p44 = scmp.eq.s32.totalorder %s43, 0
      %s46 = sadd.s32 %s45, 1
      %s47 = scalar_select %p44, %s45, %s46
      %p50 = pneg %p44
      %p51 = scmp.eq.s32.totalorder %s17, 1
      %p52 = por %p50, %p51
      %p53 = scmp.ne.s32.totalorder %s45, %s48
      %p54 = scmp.eq.s32.totalorder %s17, 0
      %p55 = por %p53, %p54
      %p56 = scmp.ne.s32.totalorder %s45, %s48
      %p57 = scmp.eq.s32.totalorder %s22, 1
      %p58 = por %p56, %p57
      %p59 = scmp.ne.s32.totalorder %s48, %s49
      %p60 = scmp.eq.s32.totalorder %s22, 0
      %p61 = por %p59, %p60
      %p62 = scmp.ne.s32.totalorder %s48, %s49
      %p63 = scmp.eq.s32.totalorder %s23, 1
      %p64 = por %p62, %p63
      %p66 = scmp.ne.s32.totalorder %s49, %s65
      %p67 = scmp.eq.s32.totalorder %s23, 0
      %p68 = por %p66, %p67
      %s69 = sadd.s32 %s24, %s25
      %p70 = scmp.lt.s32.totalorder %s69, 0
      %s71 = scalar_select %p70, %s69, 0
      %s72 = sadd.s32 %s36, %s32
      %p73 = scmp.lt.s32.totalorder %s72, 0
      %s74 = scalar_select %p73, %s72, 0
      %s75 = ssub.s32 %s71, %s74
      %p76 = scmp.eq.s32.totalorder %s75, 0
      %s78 = sadd.s32 %s77, 1
      %s79 = scalar_select %p76, %s77, %s78
      %p82 = pneg %p76
      %p83 = scmp.eq.s32.totalorder %s17, 1
      %p84 = por %p82, %p83
      %p85 = scmp.ne.s32.totalorder %s77, %s80
      %p86 = scmp.eq.s32.totalorder %s17, 0
      %p87 = por %p85, %p86
      %p88 = scmp.ne.s32.totalorder %s77, %s80
      %p89 = scmp.eq.s32.totalorder %s22, 1
      %p90 = por %p88, %p89
      %p91 = scmp.ne.s32.totalorder %s80, %s81
      %p92 = scmp.eq.s32.totalorder %s22, 0
      %p93 = por %p91, %p92
      %p94 = scmp.ne.s32.totalorder %s80, %s81
      %p95 = scmp.eq.s32.totalorder %s23, 1
      %p96 = por %p94, %p95
      %p98 = scmp.ne.s32.totalorder %s81, %s97
      %p99 = scmp.eq.s32.totalorder %s23, 0
      %p100 = por %p98, %p99
      %s101 = ssub.s32 %s24, %s36
      %p102 = scmp.eq.s32.totalorder %s101, 0
      %s104 = sadd.s32 %s103, 1
      %s105 = scalar_select %p102, %s103, %s104
      %p108 = pneg %p102
      %p109 = scmp.eq.s32.totalorder %s17, 1
      %p110 = por %p108, %p109
      %p111 = scmp.ne.s32.totalorder %s103, %s106
      %p112 = scmp.eq.s32.totalorder %s17, 0
      %p113 = por %p111, %p112
      %p114 = scmp.ne.s32.totalorder %s103, %s106
      %p115 = scmp.eq.s32.totalorder %s22, 1
      %p116 = por %p114, %p115
      %p117 = scmp.ne.s32.totalorder %s106, %s107
      %p118 = scmp.eq.s32.totalorder %s22, 0
      %p119 = por %p117, %p118
      %p120 = scmp.ne.s32.totalorder %s106, %s107
      %p121 = scmp.eq.s32.totalorder %s23, 1
      %p122 = por %p120, %p121
      %p124 = scmp.ne.s32.totalorder %s107, %s123
      %p125 = scmp.eq.s32.totalorder %s23, 0
      %p126 = por %p124, %p125
      %p127 = scmp.le.s32.totalorder 1, %s17
      %p128 = scmp.lt.s32.totalorder %s17, 3
      %p129 = pnand %p127, %p128
      %p130 = pneg %p129
      // Predicated region
      $region9: #{tpu_custom_call.1} parent=5 // pred_check
        _
      $region10: #{tpu_custom_call.1} parent=5 // pred_check_branch
        %132 = sbr.rel (%p129) target = $region12
      $region11: #{tpu_custom_call.1} parent=5 // pred_region
        %s133 = ssub.s32 %s17, 1
      $region12: #{tpu_custom_call.1} parent=5 // pred_fallthru
        _
      %p134 = scmp.lt.s32.totalorder %s17, 2
      // Predicated region
      $region13: #{tpu_custom_call.1} parent=5 // pred_check
        %p135 = pneg %p134
      $region14: #{tpu_custom_call.1} parent=5 // pred_check_branch
        %137 = sbr.rel (%p135) target = $region16
      $region15: #{tpu_custom_call.1} parent=5 // pred_region
        // Predicated region
        $region17: #{tpu_custom_call.1} parent=15 // pred_check
          %p138 = pneg %p55
        $region18: #{tpu_custom_call.1} parent=15 // pred_check_branch
          %140 = sbr.rel (%p138) target = $region20
        $region19: #{tpu_custom_call.1} parent=15 // pred_region
          %s141 = sand.u32 %s45, 1
          %s142 = scalar_lea.sflag [#allocation3], %s141
          %s143 = sand.u32 %s45, 1
          %s144 = smul.addr %s143, 16
          %s145 = scalar_lea.vmem [#allocation2], %s144
          %s146 = sadd.s32 %s24, %s25
          %p147 = scmp.lt.s32.totalorder %s146, 0
          %s148 = scalar_select %p147, %s146, 0
          %s149 = smul.u32 2, %s148
          %s151 = ssub.s32 256, 256
          %152 = vsyncadd %s142, %s151
          %s153 = smul.addr %s149, 128
          %s154 = scalar_lea.hbm %s0, %s153
          %s155 = sshll.u32 %s145, 4
          %s156 = int_to_ptr.vmem [resolvable:$true] %s155
          %161 = dma.hbm_to_vmem [thread:$0]  %s154, 256, %s156, %s142, 128, 128, 8
        $region20: #{tpu_custom_call.1} parent=15 // pred_fallthru
          _
        // Predicated region
        $region21: #{tpu_custom_call.1} parent=15 // pred_check
          %p162 = pneg %p87
        $region22: #{tpu_custom_call.1} parent=15 // pred_check_branch
          %164 = sbr.rel (%p162) target = $region24
        $region23: #{tpu_custom_call.1} parent=15 // pred_region
          %s165 = sand.u32 %s77, 1
          %s166 = scalar_lea.sflag [#allocation6], %s165
          %s167 = sand.u32 %s77, 1
          %s168 = smul.addr %s167, 16
          %s169 = scalar_lea.vmem [#allocation5], %s168
          %s170 = sadd.s32 %s24, %s25
          %p171 = scmp.lt.s32.totalorder %s170, 0
          %s172 = scalar_select %p171, %s170, 0
          %s173 = smul.u32 2, %s172
          %s175 = ssub.s32 256, 256
          %176 = vsyncadd %s166, %s175
          %s177 = smul.addr %s173, 128
          %s178 = scalar_lea.hbm %s1, %s177
          %s179 = sshll.u32 %s169, 4
          %s180 = int_to_ptr.vmem [resolvable:$true] %s179
          %185 = dma.hbm_to_vmem [thread:$0]  %s178, 256, %s180, %s166, 128, 128, 8
        $region24: #{tpu_custom_call.1} parent=15 // pred_fallthru
          _
      $region16: #{tpu_custom_call.1} parent=5 // pred_fallthru
        _
      %p186 = scmp.le.s32.totalorder 1, %s17
      %p187 = scmp.lt.s32.totalorder %s17, 3
      %p188 = pnand %p186, %p187
      %p189 = pneg %p188
      // Predicated region
      $region25: #{tpu_custom_call.1} parent=5 // pred_check
        _
      $region26: #{tpu_custom_call.1} parent=5 // pred_check_branch
        %191 = sbr.rel (%p188) target = $region28
      $region27: #{tpu_custom_call.1} parent=5 // pred_region
        %s192 = ssub.s32 %s17, 1
        %s193 = sand.u32 %s48, 1
        %s194 = scalar_lea.sflag [#allocation3], %s193
        %s195 = sand.u32 %s48, 1
        %s196 = smul.addr %s195, 16
        %s197 = scalar_lea.vmem [#allocation2], %s196
        // Predicated region
        $region29: #{tpu_custom_call.1} parent=27 // pred_check
          %p198 = pneg %p61
        $region30: #{tpu_custom_call.1} parent=27 // pred_check_branch
          %200 = sbr.rel (%p198) target = $region32
        $region31: #{tpu_custom_call.1} parent=27 // pred_region
          %201 = dma.done %s194, 256
        $region32: #{tpu_custom_call.1} parent=27 // pred_fallthru
          _
        %s202 = sand.u32 %s80, 1
        %s203 = scalar_lea.sflag [#allocation6], %s202
        %s204 = sand.u32 %s80, 1
        %s205 = smul.addr %s204, 16
        %s206 = scalar_lea.vmem [#allocation5], %s205
        // Predicated region
        $region33: #{tpu_custom_call.1} parent=27 // pred_check
          %p207 = pneg %p93
        $region34: #{tpu_custom_call.1} parent=27 // pred_check_branch
          %209 = sbr.rel (%p207) target = $region36
        $region35: #{tpu_custom_call.1} parent=27 // pred_region
          %210 = dma.done %s203, 256
        $region36: #{tpu_custom_call.1} parent=27 // pred_fallthru
          _
        %s211 = sand.u32 %s48, 1
        %s212 = scalar_lea.sflag [#allocation3], %s211
        %s213 = sand.u32 %s48, 1
        %s214 = smul.addr %s213, 16
        %s215 = scalar_lea.vmem [#allocation2], %s214
        %p216 = pneg %p61
        %p217 = pneg %p58
        %s218 = sand.u32 %s80, 1
        %s219 = scalar_lea.sflag [#allocation6], %s218
        %s220 = sand.u32 %s80, 1
        %s221 = smul.addr %s220, 16
        %s222 = scalar_lea.vmem [#allocation5], %s221
        %p223 = pneg %p93
        %p224 = pneg %p90
        %p225 = pneg %p119
        %p226 = pneg %p116
        %s227 = sand.u32 %s106, 1
        %s228 = scalar_lea.sflag [#allocation4], %s227
        %s229 = sand.u32 %s106, 1
        %s230 = smul.addr %s229, 8
        %s231 = scalar_lea.vmem [#allocation7], %s230
        %s232 = sadd.s32 %s26, %s27
        %p233 = scmp.lt.s32.totalorder %s232, 0
        %s234 = scalar_select %p233, %s232, 0
        %s235 = smul.u32 2, %s234
        %s236 = sadd.s32 %s26, %s27
        %p237 = scmp.lt.s32.totalorder %s236, 0
        %s238 = scalar_select %p237, %s236, 0
        %s239 = smul.u32 2, %s238
        %p240 = scmp.eq.s32.totalorder %s27, 0
        // Predicated region
        $region37: #{tpu_custom_call.1} parent=27 // pred_check
          %p241 = pneg %p240
        $region38: #{tpu_custom_call.1} parent=27 // pred_check_branch
          %243 = sbr.rel (%p241) target = $region40
        $region39: #{tpu_custom_call.1} parent=27 // pred_region
          %244 = vst [vmem:[%s231] sm:$0xff] 0.0
        $region40: #{tpu_custom_call.1} parent=27 // pred_fallthru
          _
        %v245 = vld [vmem:[%s197] sm:$0xff]
        %v246 = vld [vmem:[%s197 + $0x8] sm:$0xff]
        %v247 = vld [vmem:[%s206] sm:$0xff]
        %v248 = vld [vmem:[%s206 + $0x8] sm:$0xff]
        %v249 = vmax.f32 %v245, 0.0
        %v250 = vmax.f32 %v246, 0.0
        %v251 = vmul.f32 %v245, %v247
        %v252 = vmul.f32 %v246, %v248
        %v253 = vsub.f32 %v249, %v251
        %v254 = vsub.f32 %v250, %v252
        %v255 = vand.u32 2147483647, %v245
        %v256 = vand.u32 2147483647, %v246
        %v257 = vsub.f32 0.0, %v255
        %v258 = vsub.f32 0.0, %v256
        %v259 = vmul.f32 %v257, 1.442695
        %v260 = vpow.pop %v259
        %v261 = vmul.f32 %v258, 1.442695
        %v262 = vpow.pop %v261
        %v263 = vadd.f32 %v260, 1.0
        %v264 = vlog2.pop %v263
        %v265 = vmul.f32 %v264, 0.6931472
        %v266 = vmul.f32 -0.5, %v260
        %v267 = vadd.f32 %v266, 1.0
        %v268 = vmul.f32 %v267, %v260
        %v269 = vand.u32 2147483647, %v260
        %vm270 = vcmp.lt.f32.partialorder %v269, 0.0004427343
        %v271 = vsel %vm270, %v268, %v265
        %v272 = vadd.f32 %v262, 1.0
        %v273 = vlog2.pop %v272
        %v274 = vmul.f32 %v273, 0.6931472
        %v275 = vmul.f32 -0.5, %v262
        %v276 = vadd.f32 %v275, 1.0
        %v277 = vmul.f32 %v276, %v262
        %v278 = vand.u32 2147483647, %v262
        %vm279 = vcmp.lt.f32.partialorder %v278, 0.0004427343
        %v280 = vsel %vm279, %v277, %v274
        %v281 = vadd.f32 %v253, %v271
        %v282 = vadd.f32 %v254, %v280
        %vm283 = vcmp.ne.f32.partialorder %v247, -100.0
        %vm284 = vcmp.ne.f32.partialorder %v248, -100.0
        %s285 = sadd.s32 %s26, %s27
        %s286 = smul.u32 %s285, 16
        %v287 = vlaneseq
        %v288 = vshrl.u32 %v287, 7
        %v289 = vadd.s32 %v288, 8
        %v290 = vstv %s286
        %v291 = vadd.s32 %v290, %v288
        %v292 = vadd.s32 %v290, %v289
        %vm293 = vcmp.lt.s32.totalorder %v291, 16
        %vm294 = vcmp.lt.s32.totalorder %v292, 16
        %vm295 = vmand %vm283, %vm293
        %vm296 = vmand %vm284, %vm294
        %v297 = vsel %vm295, %v281, 0.0
        %v298 = vsel %vm296, %v282, 0.0
        %v299 = vld [vmem:[%s231] sm:$0xff]
        %v300 = vadd.f32 %v297, %v298
        %v301 = vadd.f32 %v299, %v300
        %302 = vst [vmem:[%s231] sm:$0xff] %v301
        %s303 = sand.u32 %s106, 1
        %s304 = scalar_lea.sflag [#allocation4], %s303
        %s305 = sand.u32 %s106, 1
        %s306 = smul.addr %s305, 8
        %s307 = scalar_lea.vmem [#allocation7], %s306
        // Predicated region
        $region41: #{tpu_custom_call.1} parent=27 // pred_check
          %p308 = pneg %p116
        $region42: #{tpu_custom_call.1} parent=27 // pred_check_branch
          %310 = sbr.rel (%p308) target = $region44
        $region43: #{tpu_custom_call.1} parent=27 // pred_region
          %s312 = ssub.s32 128, 128
          %313 = vsyncadd %s304, %s312
          %s314 = smul.addr %s26, 128
          %s315 = scalar_lea.hbm %s2, %s314
          %s317 = sshll.u32 %s307, 4
          %s318 = int_to_ptr.vmem [resolvable:$true] %s317
          %320 = dma.vmem_to_hbm [thread:$0]  %s318, 128, %s315, %s304
        $region44: #{tpu_custom_call.1} parent=27 // pred_fallthru
          _
      $region28: #{tpu_custom_call.1} parent=5 // pred_fallthru
        _
      %p321 = scmp.le.s32.totalorder 2, %s17
      // Predicated region
      $region45: #{tpu_custom_call.1} parent=5 // pred_check
        %p322 = pneg %p321
      $region46: #{tpu_custom_call.1} parent=5 // pred_check_branch
        %324 = sbr.rel (%p322) target = $region48
      $region47: #{tpu_custom_call.1} parent=5 // pred_region
        %s325 = ssub.s32 %s17, 2
        // Predicated region
        $region49: #{tpu_custom_call.1} parent=47 // pred_check
          %p326 = pneg %p122
        $region50: #{tpu_custom_call.1} parent=47 // pred_check_branch
          %328 = sbr.rel (%p326) target = $region52
        $region51: #{tpu_custom_call.1} parent=47 // pred_region
          %s329 = sand.u32 %s107, 1
          %s330 = scalar_lea.sflag [#allocation4], %s329
          %s331 = sand.u32 %s107, 1
          %s332 = smul.addr %s331, 8
          %s333 = scalar_lea.vmem [#allocation7], %s332
          %334 = dma.done %s330, 128
        $region52: #{tpu_custom_call.1} parent=47 // pred_fallthru
          _
      $region48: #{tpu_custom_call.1} parent=5 // pred_fallthru
        _
    $region6: #{tpu_custom_call.1} parent=1 // loop_footer
      %s21 = sadd.s32 1, %s17
    $region7: #{tpu_custom_call.1} parent=1 // loop_footer_branch
      %16 = sbr.rel target = $region3
    $region8: #{tpu_custom_call.1} parent=1 // loop_exit
      _
    %335 = vsyncpa [#allocation3], 1
    %s336 = scalar_lea.sflag [#allocation3], 1
    %337 = vsyncpa %s336, 1
    %338 = vsyncpa [#allocation6], 1
    %s339 = scalar_lea.sflag [#allocation6], 1
    %340 = vsyncpa %s339, 1
    %341 = vsyncpa [#allocation4], 1
    %s342 = scalar_lea.sflag [#allocation4], 1
    %343 = vsyncpa %s342, 1

</llo_original>
